<compile_context>
chip_gen: v5e
topology: v5e:2x2
jax: 0.10.0
libtpu: 0.0.40
codegen_flags: <defaults>
</compile_context>

<pallas_src>
import math

import jax
import jax.numpy as jnp
from jax.experimental import pallas as pl
from jax.experimental.pallas import tpu as pltpu


def _pe_kernel(a_ref, s_ref, c_ref, o_ref):
    """out[r0+dr, l] = sin((r0+dr)*a[l] + b[l])
                     = S[dr,l]*cos(r0*a[l]) + C[dr,l]*sin(r0*a[l])

    S/C are precomputed base tiles resident in VMEM (index_map -> (0,0) every
    step), so the only per-step transcendental work is the (1, lanes) sin/cos
    of r0*a; the per-element work is 2 mul + 1 add with no integer index math.
    """
    i = pl.program_id(0)
    tile_rows = o_ref.shape[0]
    r0 = (i * tile_rows).astype(jnp.float32)
    phi0 = r0 * a_ref[...]                       # (1, lanes): tiny per-step work
    o_ref[...] = s_ref[...] * jnp.cos(phi0) + c_ref[...] * jnp.sin(phi0)


def _pick_tile(total_rows: int, row_bytes: int, target_bytes: int):
    """Pick (tile_rows, padded_rows).

    tile_rows is a multiple of 8 (or == total_rows for small problems) sized
    to ~target_bytes per output block. If no reasonable divisor of total_rows
    exists, we pad the row count up to a multiple of the tile and slice the
    tail off in the wrapper (never fall back to one giant block).
    """
    max_rows = max(8, (target_bytes // row_bytes) // 8 * 8)
    if total_rows <= max_rows:
        return total_rows, total_rows
    # Prefer an exact divisor (no padded tail), but don't let tiles get tiny.
    t = max_rows
    floor = max(8, (max_rows // 4) // 8 * 8)
    while t >= floor:
        if total_rows % t == 0:
            return t, total_rows
        t -= 8
    t = max_rows
    padded = ((total_rows + t - 1) // t) * t
    return t, padded


def position_encoding(n_samples: int, dim: int, *, tile_rows: int | None = None):
    """Pallas equivalent of Position(dim).forward(n_samples) -> (1, n_samples, dim) f32."""
    assert dim % 2 == 0, "dim must be even (same constraint as the PyTorch module)"

    ln10k = math.log(10000.0)

    # Lane-dense flat layout: write a (rows, lanes) slab with lanes = lcm(dim, 128)
    # (full-width unmasked stores) whenever the flat output divides evenly.
    lanes_flat = (dim * 128) // math.gcd(dim, 128)
    use_flat = (lanes_flat <= 2048) and ((n_samples * dim) % lanes_flat == 0)

    if use_flat:
        lanes = lanes_flat
        per_row = lanes // dim                   # whole positions per flat row
        total_rows = (n_samples * dim) // lanes
        lane = jnp.arange(lanes, dtype=jnp.int32)
        col = lane % dim
        pos_in_row = (lane // dim).astype(jnp.float32)
    else:
        lanes = dim                              # masked-store fallback
        per_row = 1
        total_rows = n_samples
        col = jnp.arange(dim, dtype=jnp.int32)
        pos_in_row = jnp.zeros((dim,), jnp.float32)

    # Column-only tables (computed once, tiny):  pe = sin(row * a + b)
    two_i = (col & (~1)).astype(jnp.float32)                 # 2 * (col // 2)
    inv_freq = jnp.exp(-(two_i / float(dim)) * ln10k)        # 1 / 10000**(2i/dim)
    phase = (col & 1).astype(jnp.float32) * (math.pi / 2.0)  # cos(x) == sin(x + pi/2)
    a = (float(per_row) * inv_freq)[None, :]                 # (1, lanes)
    b = (pos_in_row * inv_freq + phase)[None, :]             # (1, lanes)

    # Generation-aware tile sizing (v7x has half the VMEM of v5e/v6e).
    try:
        vmem_cap = int(pltpu.get_tpu_info().vmem_capacity_bytes)
    except Exception:
        vmem_cap = 64 << 20  # conservative (v7x-sized) fallback
    target_tile_bytes = max(1 << 20, min(8 << 20, vmem_cap // 16))

    if tile_rows is None:
        tile_rows, padded_rows = _pick_tile(total_rows, lanes * 4, target_tile_bytes)
    else:
        assert tile_rows % 8 == 0 or tile_rows == total_rows
        padded_rows = ((total_rows + tile_rows - 1) // tile_rows) * tile_rows

    # Base tiles for the angle-addition identity (computed once in the wrapper,
    # resident in VMEM across all grid steps).
    dr = jnp.arange(tile_rows, dtype=jnp.float32)[:, None]   # (tile_rows, 1)
    phi = dr * a + b
    s_base = jnp.sin(phi)                                     # (tile_rows, lanes)
    c_base = jnp.cos(phi)

    tile_bytes = tile_rows * lanes * 4
    # Budget: 2x double-buffered output tile + 2x each resident base tile + slack.
    vmem_limit = int(min(vmem_cap * 3 // 4, max(32 << 20, 8 * tile_bytes)))

    grid = (padded_rows // tile_rows,)
    flat = pl.pallas_call(
        _pe_kernel,
        out_shape=jax.ShapeDtypeStruct((padded_rows, lanes), jnp.float32),
        grid=grid,
        in_specs=[
            pl.BlockSpec((1, lanes), lambda i: (0, 0)),           # a (resident)
            pl.BlockSpec((tile_rows, lanes), lambda i: (0, 0)),   # S base (resident)
            pl.BlockSpec((tile_rows, lanes), lambda i: (0, 0)),   # C base (resident)
        ],
        out_specs=pl.BlockSpec((tile_rows, lanes), lambda i: (i, 0)),
        # TODO(synk): on v7x, verify the row axis shards across both TensorCores;
        # switch to pltpu.CORE_PARALLEL / pl.core_map if profiling shows one TC idle.
        compiler_params=pltpu.CompilerParams(
            dimension_semantics=("parallel",),
            vmem_limit_bytes=vmem_limit,
        ),
    )(a, s_base, c_base)

    if padded_rows != total_rows:
        flat = flat[:total_rows]
    # Contiguous row-major reshape back to the module's (1, N, D) layout (free).
    return flat.reshape(1, n_samples, dim)


def _reference(n_samples: int, dim: int):
    """Pure-JAX reference mirroring the PyTorch code exactly."""
    position = jnp.arange(n_samples, dtype=jnp.float32)[:, None]   # (N, 1)
    _2i = jnp.arange(0, dim, 2, dtype=jnp.float32)                  # (D/2,)
    div = 10000.0 ** (_2i / dim)                                    # (D/2,)
    pe = jnp.zeros((1, n_samples, dim), jnp.float32)
    pe = pe.at[0, :, 0::2].set(jnp.sin(position / div))
    pe = pe.at[0, :, 1::2].set(jnp.cos(position / div))
    return pe


if __name__ == "__main__":
    # The module takes no tensor inputs; PRNGKey(0) only keeps setup conventional.
    _ = jax.random.PRNGKey(0)

    # Primary small case (lane-dense flat path: lanes = lcm(32, 128) = 128).
    n_samples, dim = 8, 32
    out = jax.block_until_ready(position_encoding(n_samples, dim))
    ref = _reference(n_samples, dim)
    assert out.shape == (1, n_samples, dim)
    assert out.dtype == jnp.float32
    assert jnp.allclose(out, ref, atol=1e-5, rtol=1e-5), "mismatch vs reference (flat path)"

    # Secondary small checks:
    #   (16, 256): dim is a multiple of 128 (lane-aligned path),
    #   (24, 48):  lcm(48,128)=384 lane-dense path (previously masked fallback),
    #   (10, 200): lcm too large -> masked-store standard path.
    for ns, d in [(16, 256), (24, 48), (10, 200)]:
        o = jax.block_until_ready(position_encoding(ns, d))
        r = _reference(ns, d)
        assert jnp.allclose(o, r, atol=1e-5, rtol=1e-5), f"mismatch vs reference ({ns},{d})"

    print("KERNEL_OK")
</pallas_src>

<mosaic_0001>
module attributes {stable_mosaic.version = 11 : i64} {
  func.func @_pe_kernel(%arg0: i32, %arg1: memref<1x128xf32, #tpu.memory_space<vmem>>, %arg2: memref<2x128xf32, #tpu.memory_space<vmem>>, %arg3: memref<2x128xf32, #tpu.memory_space<vmem>>, %arg4: memref<2x128xf32, #tpu.memory_space<vmem>>) attributes {dimension_semantics = [#tpu.dimension_semantics<parallel>], iteration_bounds = array<i64: 1>, scalar_prefetch = 0 : i64, scratch_operands = 0 : i64, tpu.core_type = #tpu.core_type<tc>, window_params = [{pipeline_mode = #tpu.pipeline_mode<synchronous>, transform_indices = @transform_0, window_bounds = array<i64: 1, 128>}, {pipeline_mode = #tpu.pipeline_mode<synchronous>, transform_indices = @transform_1, window_bounds = array<i64: 2, 128>}, {pipeline_mode = #tpu.pipeline_mode<synchronous>, transform_indices = @transform_2, window_bounds = array<i64: 2, 128>}, {transform_indices = @transform_3, window_bounds = array<i64: 2, 128>}]} {
    %c2_i32 = arith.constant 2 : i32
    %0 = arith.muli %arg0, %c2_i32 : i32
    %1 = arith.sitofp %0 : i32 to f32
    %c0 = arith.constant 0 : index
    %c0_0 = arith.constant 0 : index
    %2 = vector.load %arg1[%c0, %c0_0] : memref<1x128xf32, #tpu.memory_space<vmem>>, vector<1x128xf32>
    %3 = vector.broadcast %1 : f32 to vector<1x128xf32>
    %4 = arith.mulf %3, %2 : vector<1x128xf32>
    %c0_1 = arith.constant 0 : index
    %c0_2 = arith.constant 0 : index
    %5 = vector.load %arg2[%c0_1, %c0_2] : memref<2x128xf32, #tpu.memory_space<vmem>>, vector<2x128xf32>
    %6 = math.cos %4 : vector<1x128xf32>
    %7 = vector.broadcast %6 : vector<1x128xf32> to vector<2x128xf32>
    %8 = arith.mulf %5, %7 : vector<2x128xf32>
    %c0_3 = arith.constant 0 : index
    %c0_4 = arith.constant 0 : index
    %9 = vector.load %arg3[%c0_3, %c0_4] : memref<2x128xf32, #tpu.memory_space<vmem>>, vector<2x128xf32>
    %10 = math.sin %4 : vector<1x128xf32>
    %11 = vector.broadcast %10 : vector<1x128xf32> to vector<2x128xf32>
    %12 = arith.mulf %9, %11 : vector<2x128xf32>
    %13 = arith.addf %8, %12 : vector<2x128xf32>
    %c0_5 = arith.constant 0 : index
    %c0_6 = arith.constant 0 : index
    %14 = vector.load %arg4[%c0_5, %c0_6] : memref<2x128xf32, #tpu.memory_space<vmem>>, vector<2x128xf32>
    tpu.vector_store %arg4[%c0_5, %c0_6], %13 {strides = array<i32>} : memref<2x128xf32, #tpu.memory_space<vmem>>, vector<2x128xf32>,
    return
  }
  func.func @transform_0(%arg0: i32) -> (i32, i32) {
    %c0_i32 = arith.constant 0 : i32
    %c0_i32_0 = arith.constant 0 : i32
    %c0_i32_1 = arith.constant 0 : i32
    return %c0_i32, %c0_i32_0 : i32, i32
  }
  func.func @transform_1(%arg0: i32) -> (i32, i32) {
    %c0_i32 = arith.constant 0 : i32
    %c0_i32_0 = arith.constant 0 : i32
    %c0_i32_1 = arith.constant 0 : i32
    return %c0_i32, %c0_i32_0 : i32, i32
  }
  func.func @transform_2(%arg0: i32) -> (i32, i32) {
    %c0_i32 = arith.constant 0 : i32
    %c0_i32_0 = arith.constant 0 : i32
    %c0_i32_1 = arith.constant 0 : i32
    return %c0_i32, %c0_i32_0 : i32, i32
  }
  func.func @transform_3(%arg0: i32) -> (i32, i32) {
    %c0_i32 = arith.constant 0 : i32
    %c0_i32_0 = arith.constant 0 : i32
    return %arg0, %c0_i32 : i32, i32
  }
}

</mosaic_0001>

<llo_original>
// kernel: tpu_custom_call.1
$region0: #{tpu_custom_call.1}
  #allocation0 [shape = 'u32[]', space=smem, size = 0x4, offset = 0x4, fixed_abs, tag = 'smem constant byte address 0x4 - core index']
  #allocation1 [shape = 'u32[72,128]{1,0:T(1,128)}', space=vmem, size = 0x9000, scoped, tag = 'internal scratch']
  %s0 = inlined_call_operand.hbm [shape: f32[1,128], index: 0, kind: input, shape index: {}]
  %s1 = inlined_call_operand.hbm [shape: f32[2,128], index: 1, kind: input, shape index: {}]
  %s2 = inlined_call_operand.hbm [shape: f32[2,128], index: 2, kind: input, shape index: {}]
  %s3 = inlined_call_operand.hbm [shape: f32[2,128], index: 3, kind: output, shape index: {}]
  %s4 = sld [smem:[#allocation0]]
  $region34: #{tpu_custom_call.1} parent=0
    _
  %s6 = ssub.s32 1, %s4
  %s7 = scalar_select 0, %s6, %s4
  $region1: #{tpu_custom_call.1} parent=0
    #allocation2 [shape = 'u8[512]{0}', space=vmem, size = 0x400, scoped, tag = 'input window, operand 0, single buffered']
    #allocation3 [shape = 's32[1]{0}', space=sflag, size = 0x4, scoped, tag = 'scoped memory for tpu_custom_call.1']
    #allocation4 [shape = 's32[1]{0}', space=sflag, size = 0x4, scoped, tag = 'scoped memory for tpu_custom_call.1']
    #allocation5 [shape = 'u8[1024]{0}', space=vmem, size = 0x400, scoped, tag = 'input window, operand 1, single buffered']
    #allocation6 [shape = 's32[1]{0}', space=sflag, size = 0x4, scoped, tag = 'scoped memory for tpu_custom_call.1']
    #allocation7 [shape = 'u8[1024]{0}', space=vmem, size = 0x400, scoped, tag = 'input window, operand 2, single buffered']
    #allocation8 [shape = 'u8[1024]{0}', space=vmem, size = 0x400, scoped, tag = 'output window, operand 0, single buffered']
    %8 = vsyncpa [#allocation3], 0
    %9 = vsyncpa [#allocation6], 0
    %10 = vsyncpa [#allocation4], 0
    // Predicated region
    $region2: #{tpu_custom_call.1} parent=1 // pred_check
      _
    $region3: #{tpu_custom_call.1} parent=1 // pred_check_branch
      %12 = sbr.rel (0) target = $region5
    $region4: #{tpu_custom_call.1} parent=1 // pred_region
      %14 = vsyncadd [#allocation3], 0
      %s16 = sshll.u32 %s0, 4
      %s17 = int_to_ptr.hbm [resolvable:$true] %s16
      %s18 = sshll.u32 [#allocation2], 4
      %s19 = int_to_ptr.vmem [resolvable:$true] %s18
      %21 = dma.hbm_to_vmem [thread:$0]  %s17, 16, %s19, [#allocation3]
    $region5: #{tpu_custom_call.1} parent=1 // pred_fallthru
      _
    // Predicated region
    $region6: #{tpu_custom_call.1} parent=1 // pred_check
      _
    $region7: #{tpu_custom_call.1} parent=1 // pred_check_branch
      %23 = sbr.rel (0) target = $region9
    $region8: #{tpu_custom_call.1} parent=1 // pred_region
      %25 = vsyncadd [#allocation6], 0
      %s27 = sshll.u32 %s1, 4
      %s28 = int_to_ptr.hbm [resolvable:$true] %s27
      %s29 = sshll.u32 [#allocation5], 4
      %s30 = int_to_ptr.vmem [resolvable:$true] %s29
      %32 = dma.hbm_to_vmem [thread:$0]  %s28, 32, %s30, [#allocation6]
    $region9: #{tpu_custom_call.1} parent=1 // pred_fallthru
      _
    // Predicated region
    $region10: #{tpu_custom_call.1} parent=1 // pred_check
      _
    $region11: #{tpu_custom_call.1} parent=1 // pred_check_branch
      %34 = sbr.rel (0) target = $region13
    $region12: #{tpu_custom_call.1} parent=1 // pred_region
      %36 = vsyncadd [#allocation6], 0
      %s38 = sshll.u32 %s2, 4
      %s39 = int_to_ptr.hbm [resolvable:$true] %s38
      %s40 = sshll.u32 [#allocation7], 4
      %s41 = int_to_ptr.vmem [resolvable:$true] %s40
      %43 = dma.hbm_to_vmem [thread:$0]  %s39, 32, %s41, [#allocation6]
    $region13: #{tpu_custom_call.1} parent=1 // pred_fallthru
      _
    // Predicated region
    $region14: #{tpu_custom_call.1} parent=1 // pred_check
      _
    $region15: #{tpu_custom_call.1} parent=1 // pred_check_branch
      %45 = sbr.rel (0) target = $region17
    $region16: #{tpu_custom_call.1} parent=1 // pred_region
      %47 = dma.done [#allocation3], 16
    $region17: #{tpu_custom_call.1} parent=1 // pred_fallthru
      _
    // Predicated region
    $region18: #{tpu_custom_call.1} parent=1 // pred_check
      _
    $region19: #{tpu_custom_call.1} parent=1 // pred_check_branch
      %49 = sbr.rel (0) target = $region21
    $region20: #{tpu_custom_call.1} parent=1 // pred_region
      %51 = dma.done [#allocation6], 32
    $region21: #{tpu_custom_call.1} parent=1 // pred_fallthru
      _
    // Predicated region
    $region22: #{tpu_custom_call.1} parent=1 // pred_check
      _
    $region23: #{tpu_custom_call.1} parent=1 // pred_check_branch
      %53 = sbr.rel (0) target = $region25
    $region24: #{tpu_custom_call.1} parent=1 // pred_region
      %55 = dma.done [#allocation6], 32
    $region25: #{tpu_custom_call.1} parent=1 // pred_fallthru
      _
    %s56 = smul.u32 0, 2
    %s57 = scvt.s32.f32 %s56
    %v58 = vld [vmem:[#allocation2] sm:$0x1]
    %v59 = vstv %s57
    %v60 = vmul.f32 %v59, %v58
    %v61 = vld [vmem:[#allocation5] sm:$0x3]
    %v62 = vand.u32 2147483647, %v60
    %vm63 = vcmp.le.f32.partialorder %v62, 0.7853982
    %vm64 = vcmp.lt.s32.totalorder %v60, 0
    %v65 = vand.u32 %v60, 2139095040
    %v66 = vshrl.u32 %v65, 23
    %v67 = vsub.s32 %v66, 127
    %v68 = vand.u32 2147483647, %v60
    %v69 = vand.u32 %v68, 8388607
    %v70 = vor.u32 %v69, 8388608
    %v71 = vsub.s32 0, %v70
    %v72 = vadd.s32 %v67, 1
    %vm73 = vcmp.gt.s32.totalorder %v72, 0
    %v74 = vsel %vm73, %v72, 0
    %v75 = vshrl.u32 %v74, 5
    %v76 = vand.u32 %v74, 31
    %v77 = vsub.s32 32, %v76
    %v78 = vshrl.u32 683565275, %v77
    %v79 = vshll.u32 683565275, %v76
    %v80 = vshrl.u32 2475754826, %v77
    %v81 = vor.u32 %v79, %v80
    %v82 = vshll.u32 2475754826, %v76
    %v83 = vshrl.u32 2131351028, %v77
    %v84 = vor.u32 %v82, %v83
    %v85 = vshll.u32 2131351028, %v76
    %v86 = vshrl.u32 2102212464, %v77
    %v87 = vor.u32 %v85, %v86
    %v88 = vshll.u32 2102212464, %v76
    %v89 = vshrl.u32 920167782, %v77
    %v90 = vor.u32 %v88, %v89
    %v91 = vshll.u32 920167782, %v76
    %v92 = vshrl.u32 1326507024, %v77
    %v93 = vor.u32 %v91, %v92
    %vm94 = vcmp.lt.s32.totalorder %v75, 1
    %vm95 = vcmp.lt.s32.totalorder %v75, 2
    %vm96 = vcmp.lt.s32.totalorder %v75, 3
    %vm97 = vcmp.lt.s32.totalorder %v75, 4
    %v98 = vsel %vm94, %v78, %v81
    %v99 = vsel %vm97, %v87, 2102212464
    %v100 = vsel %vm96, %v84, %v99
    %v101 = vsel %vm95, %v98, %v100
    %v102 = vsel %vm94, %v81, %v84
    %v103 = vsel %vm97, %v90, 920167782
    %v104 = vsel %vm96, %v87, %v103
    %v105 = vsel %vm95, %v102, %v104
    %v106 = vsel %vm94, %v84, %v87
    %v107 = vsel %vm97, %v93, 1326507024
    %v108 = vsel %vm96, %v90, %v107
    %v109 = vsel %vm95, %v106, %v108
    %v110 = vshll.u32 %v70, 8
    %v111 = vand.u32 %v110, 65535
    %v112 = vshrl.u32 %v110, 16
    %v113 = vand.u32 %v109, 65535
    %v114 = vshrl.u32 %v109, 16
    %v115 = vmul.u32 %v111, %v113
    %v116 = vmul.u32 %v111, %v114
    %v117 = vmul.u32 %v112, %v113
    %v118 = vmul.u32 %v112, %v114
    %v119 = vshll.u32 %v116, 16
    %v120 = vshrl.u32 %v116, 16
    %v121 = vshll.u32 %v117, 16
    %v122 = vshrl.u32 %v117, 16
    %vm123 = vc.u32 %v115, %v119
    %v124 = vsel %vm123, 1, 0
    %v125 = vadd.s32 %v115, %v119
    %v126 = vadd.s32 %v118, %v124
    %vm127 = vc.u32 %v125, %v121
    %v128 = vsel %vm127, 1, 0
    %v129 = vadd.s32 %v125, %v121
    %v130 = vadd.s32 %v126, %v128
    %v131 = vadd.s32 %v130, %v120
    %v132 = vadd.s32 %v131, %v122
    %v133 = vand.u32 %v110, 65535
    %v134 = vshrl.u32 %v110, 16
    %v135 = vand.u32 %v105, 65535
    %v136 = vshrl.u32 %v105, 16
    %v137 = vmul.u32 %v133, %v135
    %v138 = vmul.u32 %v133, %v136
    %v139 = vmul.u32 %v134, %v135
    %v140 = vmul.u32 %v134, %v136
    %v141 = vshll.u32 %v138, 16
    %v142 = vshrl.u32 %v138, 16
    %v143 = vshll.u32 %v139, 16
    %v144 = vshrl.u32 %v139, 16
    %vm145 = vc.u32 %v137, %v141
    %v146 = vsel %vm145, 1, 0
    %v147 = vadd.s32 %v137, %v141
    %v148 = vadd.s32 %v140, %v146
    %vm149 = vc.u32 %v147, %v143
    %v150 = vsel %vm149, 1, 0
    %v151 = vadd.s32 %v147, %v143
    %v152 = vadd.s32 %v148, %v150
    %v153 = vadd.s32 %v152, %v142
    %v154 = vadd.s32 %v153, %v144
    %v155 = vmul.u32 %v110, %v101
    %v156 = vadd.s32 %v132, %v151
    %vm157 = vc.u32 %v132, %v151
    %v158 = vadd.s32 %v154, 1
    %v159 = vsel %vm157, %v158, %v154
    %v160 = vadd.s32 %v155, %v159
    %v161 = vadd.s32 %v160, 536870912
    %v162 = vshrl.u32 %v161, 30
    %v163 = vshll.u32 %v162, 30
    %v164 = vsub.s32 %v160, %v163
    %vm165 = vcmp.lt.s32.totalorder %v164, 0
    %v166 = vsub.s32 0, %v164
    %v167 = vsel %vm165, %v166, %v164
    %v168 = vclz %v167
    %v169 = vsub.s32 %v168, 2
    %vm170 = vcmp.gt.s32.totalorder 0, %v169
    %v171 = vsel %vm170, 0, %v169
    %v172 = vsub.s32 32, %v171
    %v173 = vshll.u32 %v164, %v171
    %v174 = vshrl.u32 %v156, %v172
    %v175 = vor.u32 %v173, %v174
    %v176 = vsub.s32 4294967266, %v171
    %v177 = vadd.s32 %v176, 127
    %v178 = vshll.u32 %v177, 23
    %v179 = vor.u32 4788187, %v178
    %v180 = vand.u32 2147483647, %v179
    %v182 = vcvt.s32.f32 %v175
    %v183 = vmul.f32 %v182, %v180
    %v184 = vxor.u32 %v183, 2147483648
    %v185 = vsel %vm64, %v184, %v183
    %v186 = vsub.s32 4, %v162
    %v187 = vsel %vm64, %v186, %v162
    %v188 = vsel %vm63, %v60, %v185
    %v189 = vsel %vm63, 0, %v187
    %v190 = vmul.f32 %v188, %v188
    %v191 = vmul.f32 %v190, -0.001358992
    %v192 = vadd.f32 %v191, 0.041655596
    %v193 = vmul.f32 %v190, %v192
    %v194 = vadd.f32 %v193, -0.4999988
    %v195 = vmul.f32 %v190, %v194
    %v196 = vadd.f32 1.0, %v195
    %v197 = vmul.f32 %v188, %v188
    %v198 = vmul.f32 %v197, -0.00019511016
    %v199 = vadd.f32 %v198, 0.008332121
    %v200 = vmul.f32 %v197, %v199
    %v201 = vadd.f32 %v200, -0.16666654
    %v202 = vmul.f32 %v197, %v201
    %v203 = vadd.f32 %v202, 1.0
    %v204 = vmul.f32 %v203, %v188
    %vm205 = vweird.f32 %v60
    %v206 = vand.u32 %v189, 3
    %vm207 = vcmp.lt.s32.totalorder %v206, 2
    %vm208 = vcmp.eq.s32.totalorder %v206, 0
    %v209 = vxor.u32 %v204, 2147483648
    %v210 = vsel %vm208, %v196, %v209
    %vm211 = vcmp.eq.s32.totalorder %v206, 2
    %v212 = vxor.u32 %v196, 2147483648
    %v213 = vsel %vm211, %v212, %v204
    %v214 = vsel %vm207, %v210, %v213
    %v215 = vsel %vm205, nan, %v214
    %v217 = vperm.slane %v215, 0
    %v219 = vmul.f32 %v61, %v217
    %v220 = vld [vmem:[#allocation7] sm:$0x3]
    %v221 = vand.u32 2147483647, %v60
    %vm222 = vcmp.le.f32.partialorder %v221, 0.7853982
    %vm223 = vcmp.lt.s32.totalorder %v60, 0
    %v224 = vand.u32 %v60, 2139095040
    %v225 = vshrl.u32 %v224, 23
    %v226 = vsub.s32 %v225, 127
    %v227 = vand.u32 2147483647, %v60
    %v228 = vand.u32 %v227, 8388607
    %v229 = vor.u32 %v228, 8388608
    %v230 = vsub.s32 0, %v229
    %v231 = vadd.s32 %v226, 1
    %vm232 = vcmp.gt.s32.totalorder %v231, 0
    %v233 = vsel %vm232, %v231, 0
    %v234 = vshrl.u32 %v233, 5
    %v235 = vand.u32 %v233, 31
    %v236 = vsub.s32 32, %v235
    %v237 = vshrl.u32 683565275, %v236
    %v238 = vshll.u32 683565275, %v235
    %v239 = vshrl.u32 2475754826, %v236
    %v240 = vor.u32 %v238, %v239
    %v241 = vshll.u32 2475754826, %v235
    %v242 = vshrl.u32 2131351028, %v236
    %v243 = vor.u32 %v241, %v242
    %v244 = vshll.u32 2131351028, %v235
    %v245 = vshrl.u32 2102212464, %v236
    %v246 = vor.u32 %v244, %v245
    %v247 = vshll.u32 2102212464, %v235
    %v248 = vshrl.u32 920167782, %v236
    %v249 = vor.u32 %v247, %v248
    %v250 = vshll.u32 920167782, %v235
    %v251 = vshrl.u32 1326507024, %v236
    %v252 = vor.u32 %v250, %v251
    %vm253 = vcmp.lt.s32.totalorder %v234, 1
    %vm254 = vcmp.lt.s32.totalorder %v234, 2
    %vm255 = vcmp.lt.s32.totalorder %v234, 3
    %vm256 = vcmp.lt.s32.totalorder %v234, 4
    %v257 = vsel %vm253, %v237, %v240
    %v258 = vsel %vm256, %v246, 2102212464
    %v259 = vsel %vm255, %v243, %v258
    %v260 = vsel %vm254, %v257, %v259
    %v261 = vsel %vm253, %v240, %v243
    %v262 = vsel %vm256, %v249, 920167782
    %v263 = vsel %vm255, %v246, %v262
    %v264 = vsel %vm254, %v261, %v263
    %v265 = vsel %vm253, %v243, %v246
    %v266 = vsel %vm256, %v252, 1326507024
    %v267 = vsel %vm255, %v249, %v266
    %v268 = vsel %vm254, %v265, %v267
    %v269 = vshll.u32 %v229, 8
    %v270 = vand.u32 %v269, 65535
    %v271 = vshrl.u32 %v269, 16
    %v272 = vand.u32 %v268, 65535
    %v273 = vshrl.u32 %v268, 16
    %v274 = vmul.u32 %v270, %v272
    %v275 = vmul.u32 %v270, %v273
    %v276 = vmul.u32 %v271, %v272
    %v277 = vmul.u32 %v271, %v273
    %v278 = vshll.u32 %v275, 16
    %v279 = vshrl.u32 %v275, 16
    %v280 = vshll.u32 %v276, 16
    %v281 = vshrl.u32 %v276, 16
    %vm282 = vc.u32 %v274, %v278
    %v283 = vsel %vm282, 1, 0
    %v284 = vadd.s32 %v274, %v278
    %v285 = vadd.s32 %v277, %v283
    %vm286 = vc.u32 %v284, %v280
    %v287 = vsel %vm286, 1, 0
    %v288 = vadd.s32 %v284, %v280
    %v289 = vadd.s32 %v285, %v287
    %v290 = vadd.s32 %v289, %v279
    %v291 = vadd.s32 %v290, %v281
    %v292 = vand.u32 %v269, 65535
    %v293 = vshrl.u32 %v269, 16
    %v294 = vand.u32 %v264, 65535
    %v295 = vshrl.u32 %v264, 16
    %v296 = vmul.u32 %v292, %v294
    %v297 = vmul.u32 %v292, %v295
    %v298 = vmul.u32 %v293, %v294
    %v299 = vmul.u32 %v293, %v295
    %v300 = vshll.u32 %v297, 16
    %v301 = vshrl.u32 %v297, 16
    %v302 = vshll.u32 %v298, 16
    %v303 = vshrl.u32 %v298, 16
    %vm304 = vc.u32 %v296, %v300
    %v305 = vsel %vm304, 1, 0
    %v306 = vadd.s32 %v296, %v300
    %v307 = vadd.s32 %v299, %v305
    %vm308 = vc.u32 %v306, %v302
    %v309 = vsel %vm308, 1, 0
    %v310 = vadd.s32 %v306, %v302
    %v311 = vadd.s32 %v307, %v309
    %v312 = vadd.s32 %v311, %v301
    %v313 = vadd.s32 %v312, %v303
    %v314 = vmul.u32 %v269, %v260
    %v315 = vadd.s32 %v291, %v310
    %vm316 = vc.u32 %v291, %v310
    %v317 = vadd.s32 %v313, 1
    %v318 = vsel %vm316, %v317, %v313
    %v319 = vadd.s32 %v314, %v318
    %v320 = vadd.s32 %v319, 536870912
    %v321 = vshrl.u32 %v320, 30
    %v322 = vshll.u32 %v321, 30
    %v323 = vsub.s32 %v319, %v322
    %vm324 = vcmp.lt.s32.totalorder %v323, 0
    %v325 = vsub.s32 0, %v323
    %v326 = vsel %vm324, %v325, %v323
    %v327 = vclz %v326
    %v328 = vsub.s32 %v327, 2
    %vm329 = vcmp.gt.s32.totalorder 0, %v328
    %v330 = vsel %vm329, 0, %v328
    %v331 = vsub.s32 32, %v330
    %v332 = vshll.u32 %v323, %v330
    %v333 = vshrl.u32 %v315, %v331
    %v334 = vor.u32 %v332, %v333
    %v335 = vsub.s32 4294967266, %v330
    %v336 = vadd.s32 %v335, 127
    %v337 = vshll.u32 %v336, 23
    %v338 = vor.u32 4788187, %v337
    %v339 = vand.u32 2147483647, %v338
    %v341 = vcvt.s32.f32 %v334
    %v342 = vmul.f32 %v341, %v339
    %v343 = vxor.u32 %v342, 2147483648
    %v344 = vsel %vm223, %v343, %v342
    %v345 = vsub.s32 4, %v321
    %v346 = vsel %vm223, %v345, %v321
    %v347 = vsel %vm222, %v60, %v344
    %v348 = vsel %vm222, 0, %v346
    %v349 = vmul.f32 %v347, %v347
    %v350 = vmul.f32 %v349, -0.001358992
    %v351 = vadd.f32 %v350, 0.041655596
    %v352 = vmul.f32 %v349, %v351
    %v353 = vadd.f32 %v352, -0.4999988
    %v354 = vmul.f32 %v349, %v353
    %v355 = vadd.f32 1.0, %v354
    %v356 = vmul.f32 %v347, %v347
    %v357 = vmul.f32 %v356, -0.00019511016
    %v358 = vadd.f32 %v357, 0.008332121
    %v359 = vmul.f32 %v356, %v358
    %v360 = vadd.f32 %v359, -0.16666654
    %v361 = vmul.f32 %v356, %v360
    %v362 = vadd.f32 %v361, 1.0
    %v363 = vmul.f32 %v362, %v347
    %vm364 = vweird.f32 %v60
    %v365 = vadd.s32 %v348, 3
    %v366 = vand.u32 %v365, 3
    %vm367 = vcmp.lt.s32.totalorder %v366, 2
    %vm368 = vcmp.eq.s32.totalorder %v366, 0
    %v369 = vxor.u32 %v363, 2147483648
    %v370 = vsel %vm368, %v355, %v369
    %vm371 = vcmp.eq.s32.totalorder %v366, 2
    %v372 = vxor.u32 %v355, 2147483648
    %v373 = vsel %vm371, %v372, %v363
    %v374 = vsel %vm367, %v370, %v373
    %v375 = vsel %vm364, nan, %v374
    %v377 = vperm.slane %v375, 0
    %v379 = vmul.f32 %v220, %v377
    %v380 = vadd.f32 %v219, %v379
    %381 = vst [vmem:[#allocation8] sm:$0x3] %v380
    // Predicated region
    $region26: #{tpu_custom_call.1} parent=1 // pred_check
      _
    $region27: #{tpu_custom_call.1} parent=1 // pred_check_branch
      %383 = sbr.rel (0) target = $region29
    $region28: #{tpu_custom_call.1} parent=1 // pred_region
      %385 = vsyncadd [#allocation4], 0
      %s387 = sshll.u32 [#allocation8], 4
      %s388 = int_to_ptr.vmem [resolvable:$true] %s387
      %s389 = sshll.u32 %s3, 4
      %s390 = int_to_ptr.hbm [resolvable:$true] %s389
      %392 = dma.vmem_to_hbm [thread:$0]  %s388, 32, %s390, [#allocation4]
    $region29: #{tpu_custom_call.1} parent=1 // pred_fallthru
      _
    // Predicated region
    $region30: #{tpu_custom_call.1} parent=1 // pred_check
      _
    $region31: #{tpu_custom_call.1} parent=1 // pred_check_branch
      %394 = sbr.rel (0) target = $region33
    $region32: #{tpu_custom_call.1} parent=1 // pred_region
      %396 = dma.done [#allocation4], 32
    $region33: #{tpu_custom_call.1} parent=1 // pred_fallthru
      _
    %397 = vsyncpa [#allocation3], 1
    %398 = vsyncpa [#allocation6], 1
    %399 = vsyncpa [#allocation4], 1

</llo_original>
